<compile_context>
chip_gen: v6e
topology: v6e:2x2x1
jax: 0.10.0
libtpu: 0.0.40
codegen_flags: <defaults>
</compile_context>

<pallas_src>
import jax
import jax.numpy as jnp
import numpy as np
from jax.experimental import pallas as pl
from jax.experimental.pallas import tpu as pltpu

LANES = 128          # TPU lane width
BATCH_ROWS = 8       # queries per kernel call (one f32 sublane tile)
INPUT_DIM = 6        # 4 query scalars + 2 derived features
X_COLS = 16          # W1 fan-in padding (bf16 min sublane tile = 16)
HIDDEN = (32, 32)
OUTPUT_DIM = 2
DIM_NUMS = 2


def _mlp_qb_kernel(x_ref, w1_ref, b1_ref, w2_ref, b2_ref, w3_ref, b3_ref, qb_ref):
    """3-layer MLP (bf16 weights, f32 accumulation) + per-row query-box math."""
    x = x_ref[...]                                                       # (8,16) f32

    # ---- Linear -> ReLU -> Linear -> ReLU -> Linear -> Sigmoid ----
    h1 = jnp.maximum(
        jnp.dot(x.astype(jnp.bfloat16), w1_ref[...],
                preferred_element_type=jnp.float32) + b1_ref[...], 0.0)   # (8,128)
    h2 = jnp.maximum(
        jnp.dot(h1[:, :HIDDEN[0]].astype(jnp.bfloat16), w2_ref[...],
                preferred_element_type=jnp.float32) + b2_ref[...], 0.0)   # (8,128)
    logits = jnp.dot(h2[:, :HIDDEN[1]].astype(jnp.bfloat16), w3_ref[...],
                     preferred_element_type=jnp.float32) + b3_ref[...]    # (8,128)
    out = pl.reciprocal(1.0 + jnp.exp(-logits), approx=True)             # sigmoid

    # ---- query-box post-processing (per row / per dim) ----
    lo = x[:, 0:DIM_NUMS]                   # query[0:2]
    hi = x[:, DIM_NUMS:2 * DIM_NUMS]        # query[2:4]
    o = out[:, 0:DIM_NUMS]                  # model output (2 real lanes)
    radius = (hi - lo) * (o + 1.0) * 0.5
    center = (hi + lo) * 0.5
    qb_lo = jnp.where(center - radius < 0.0, 0.0, center - radius)
    qb_hi = center + radius

    qb_ref[...] = jnp.zeros_like(qb_ref)          # keep padded lanes defined
    qb_ref[:, 0:DIM_NUMS] = qb_lo                 # lanes 0..1 = qb[0:2]
    qb_ref[:, DIM_NUMS:2 * DIM_NUMS] = qb_hi      # lanes 2..3 = qb[2:4]


def init_params(key):
    """PyTorch-Linear-style uniform init; weights stored as (fan_in, fan_out) f32."""
    sizes = [(INPUT_DIM, HIDDEN[0]), (HIDDEN[0], HIDDEN[1]), (HIDDEN[1], OUTPUT_DIM)]
    params = []
    for fin, fout in sizes:
        key, k_w, k_b = jax.random.split(key, 3)
        bound = 1.0 / np.sqrt(fin)
        w = jax.random.uniform(k_w, (fin, fout), jnp.float32, -bound, bound)
        b = jax.random.uniform(k_b, (fout,), jnp.float32, -bound, bound)
        params.append((w, b))
    return params


def prepare_params(params):
    """Pad/cast ONCE outside the per-call path.

    Weights -> bf16 (fan_in_padded, 128); biases -> f32 (1, 128). Padded entries
    are zero so they never contaminate the real lanes of the activations.
    """
    (w1, b1), (w2, b2), (w3, b3) = params

    def pad_w(w, rows):
        buf = np.zeros((rows, LANES), np.float32)
        buf[: w.shape[0], : w.shape[1]] = np.asarray(w)
        return jnp.asarray(buf, dtype=jnp.bfloat16)

    def pad_b(b):
        buf = np.zeros((1, LANES), np.float32)
        buf[0, : b.shape[0]] = np.asarray(b)
        return jnp.asarray(buf)

    return (pad_w(w1, X_COLS), pad_b(b1),
            pad_w(w2, HIDDEN[0]), pad_b(b2),
            pad_w(w3, HIDDEN[1]), pad_b(b3))


def workload_transfer_forward(queries, padded_params):
    """queries: (B, 4) with B <= 8. Returns (B, 4) qb = [lo0, lo1, hi0, hi1] per row."""
    w1p, b1p, w2p, b2p, w3p, b3p = padded_params
    q = queries.astype(jnp.float32)
    b = q.shape[0]

    # query_vector_improve, batched: [q0,q1,q2,q3,(q2+q0)/2,(q3-q1)/2]
    extra = jnp.stack([(q[:, 2] + q[:, 0]) * 0.5, (q[:, 3] - q[:, 1]) * 0.5], axis=1)
    feats = jnp.concatenate([q, extra], axis=1)                           # (B, 6)
    x = jnp.zeros((BATCH_ROWS, X_COLS), jnp.float32).at[:b, :INPUT_DIM].set(feats)

    qb_full = pl.pallas_call(
        _mlp_qb_kernel,
        out_shape=jax.ShapeDtypeStruct((BATCH_ROWS, LANES), jnp.float32),
        in_specs=[pl.BlockSpec(memory_space=pltpu.MemorySpace.VMEM)] * 7,
        out_specs=pl.BlockSpec(memory_space=pltpu.MemorySpace.VMEM),
    )(x, w1p, b1p, w2p, b2p, w3p, b3p)

    # qb per row = [lo_0, lo_1, hi_0, hi_1] (torch.ones(4) init is fully overwritten)
    return qb_full[:b, : 2 * DIM_NUMS]


def reference_forward(queries, params):
    """Pure-JAX (f32) reference matching the PyTorch module semantics, per query."""
    (w1, b1), (w2, b2), (w3, b3) = params

    def one(query):
        extra = jnp.array([(query[2] + query[0]) / 2.0,
                           (query[3] - query[1]) / 2.0], jnp.float32)
        x = jnp.concatenate([query.astype(jnp.float32), extra])[None, :]
        x = jnp.maximum(x @ w1 + b1, 0.0)
        x = jnp.maximum(x @ w2 + b2, 0.0)
        out = jax.nn.sigmoid(x @ w3 + b3)[0]
        qb = jnp.ones(2 * DIM_NUMS, jnp.float32)
        for dim in range(DIM_NUMS):
            radius = (query[dim + DIM_NUMS] - query[dim]) * (out[dim] + 1.0) / 2.0
            center = (query[dim + DIM_NUMS] + query[dim]) / 2.0
            qb = qb.at[dim].set(jnp.where(center - radius < 0.0, 0.0, center - radius))
            qb = qb.at[dim + DIM_NUMS].set(center + radius)
        return qb

    return jnp.stack([one(queries[i]) for i in range(queries.shape[0])])


if __name__ == "__main__":
    key = jax.random.PRNGKey(0)
    k_q, k_p = jax.random.split(key)

    # Batch of 8 queries = [x_lo, y_lo, x_hi, y_hi] with hi > lo.
    u = jax.random.uniform(k_q, (BATCH_ROWS, 4), jnp.float32)
    queries = jnp.concatenate([u[:, :2] * 0.4, 0.6 + u[:, 2:] * 0.4], axis=1)

    params = init_params(k_p)
    padded = prepare_params(params)          # pad/cast once, reused across calls

    forward = jax.jit(workload_transfer_forward)
    qb = forward(queries, padded)
    jax.block_until_ready(qb)

    ref = reference_forward(queries, params)
    np.testing.assert_allclose(np.asarray(qb), np.asarray(ref), rtol=2e-2, atol=2e-2)

    print("KERNEL_OK")
</pallas_src>

<mosaic_0001>
module attributes {stable_mosaic.version = 11 : i64} {
  func.func @_mlp_qb_kernel(%arg0: memref<8x16xf32, #tpu.memory_space<vmem>>, %arg1: memref<16x128xbf16, #tpu.memory_space<vmem>>, %arg2: memref<1x128xf32, #tpu.memory_space<vmem>>, %arg3: memref<32x128xbf16, #tpu.memory_space<vmem>>, %arg4: memref<1x128xf32, #tpu.memory_space<vmem>>, %arg5: memref<32x128xbf16, #tpu.memory_space<vmem>>, %arg6: memref<1x128xf32, #tpu.memory_space<vmem>>, %arg7: memref<8x128xf32, #tpu.memory_space<vmem>>) attributes {dimension_semantics = [], scalar_prefetch = 0 : i64, scratch_operands = 0 : i64, tpu.core_type = #tpu.core_type<tc>} {
    %c0 = arith.constant 0 : index
    %c0_0 = arith.constant 0 : index
    %0 = vector.load %arg0[%c0, %c0_0] : memref<8x16xf32, #tpu.memory_space<vmem>>, vector<8x16xf32>
    %1 = arith.truncf %0 : vector<8x16xf32> to vector<8x16xbf16>
    %c0_1 = arith.constant 0 : index
    %c0_2 = arith.constant 0 : index
    %2 = vector.load %arg1[%c0_1, %c0_2] : memref<16x128xbf16, #tpu.memory_space<vmem>>, vector<16x128xbf16>
    %cst = arith.constant dense<0.000000e+00> : vector<8x128xf32>
    %3 = tpu.matmul %1, %2, %cst {dimension_numbers = #tpu.dot_dimension_numbers<[1], [0], [0], [1], [0, 0, 1, 1], [], []>} : vector<8x16xbf16>, vector<16x128xbf16>, vector<8x128xf32> -> vector<8x128xf32>
    %c0_3 = arith.constant 0 : index
    %c0_4 = arith.constant 0 : index
    %4 = vector.load %arg2[%c0_3, %c0_4] : memref<1x128xf32, #tpu.memory_space<vmem>>, vector<1x128xf32>
    %5 = vector.broadcast %4 : vector<1x128xf32> to vector<8x128xf32>
    %6 = arith.addf %3, %5 : vector<8x128xf32>
    %cst_5 = arith.constant 0.000000e+00 : f32
    %7 = vector.broadcast %cst_5 : f32 to vector<8x128xf32>
    %8 = arith.maximumf %6, %7 : vector<8x128xf32>
    %9 = vector.extract_strided_slice %8 {offsets = [0, 0], sizes = [8, 32], strides = [1, 1]} : vector<8x128xf32> to vector<8x32xf32>
    %10 = arith.truncf %9 : vector<8x32xf32> to vector<8x32xbf16>
    %c0_6 = arith.constant 0 : index
    %c0_7 = arith.constant 0 : index
    %11 = vector.load %arg3[%c0_6, %c0_7] : memref<32x128xbf16, #tpu.memory_space<vmem>>, vector<32x128xbf16>
    %cst_8 = arith.constant dense<0.000000e+00> : vector<8x128xf32>
    %12 = tpu.matmul %10, %11, %cst_8 {dimension_numbers = #tpu.dot_dimension_numbers<[1], [0], [0], [1], [0, 0, 1, 1], [], []>} : vector<8x32xbf16>, vector<32x128xbf16>, vector<8x128xf32> -> vector<8x128xf32>
    %c0_9 = arith.constant 0 : index
    %c0_10 = arith.constant 0 : index
    %13 = vector.load %arg4[%c0_9, %c0_10] : memref<1x128xf32, #tpu.memory_space<vmem>>, vector<1x128xf32>
    %14 = vector.broadcast %13 : vector<1x128xf32> to vector<8x128xf32>
    %15 = arith.addf %12, %14 : vector<8x128xf32>
    %cst_11 = arith.constant 0.000000e+00 : f32
    %16 = vector.broadcast %cst_11 : f32 to vector<8x128xf32>
    %17 = arith.maximumf %15, %16 : vector<8x128xf32>
    %18 = vector.extract_strided_slice %17 {offsets = [0, 0], sizes = [8, 32], strides = [1, 1]} : vector<8x128xf32> to vector<8x32xf32>
    %19 = arith.truncf %18 : vector<8x32xf32> to vector<8x32xbf16>
    %c0_12 = arith.constant 0 : index
    %c0_13 = arith.constant 0 : index
    %20 = vector.load %arg5[%c0_12, %c0_13] : memref<32x128xbf16, #tpu.memory_space<vmem>>, vector<32x128xbf16>
    %cst_14 = arith.constant dense<0.000000e+00> : vector<8x128xf32>
    %21 = tpu.matmul %19, %20, %cst_14 {dimension_numbers = #tpu.dot_dimension_numbers<[1], [0], [0], [1], [0, 0, 1, 1], [], []>} : vector<8x32xbf16>, vector<32x128xbf16>, vector<8x128xf32> -> vector<8x128xf32>
    %c0_15 = arith.constant 0 : index
    %c0_16 = arith.constant 0 : index
    %22 = vector.load %arg6[%c0_15, %c0_16] : memref<1x128xf32, #tpu.memory_space<vmem>>, vector<1x128xf32>
    %23 = vector.broadcast %22 : vector<1x128xf32> to vector<8x128xf32>
    %24 = arith.addf %21, %23 : vector<8x128xf32>
    %cst_17 = arith.constant 0.000000e+00 : f32
    %25 = vector.broadcast %cst_17 : f32 to vector<8x128xf32>
    %26 = arith.subf %25, %24 : vector<8x128xf32>
    %27 = math.exp %26 : vector<8x128xf32>
    %cst_18 = arith.constant 1.000000e+00 : f32
    %28 = vector.broadcast %cst_18 : f32 to vector<8x128xf32>
    %29 = arith.addf %28, %27 : vector<8x128xf32>
    %30 = tpu.reciprocal %29 {approx = true} : vector<8x128xf32> -> vector<8x128xf32>
    %31 = vector.extract_strided_slice %0 {offsets = [0, 0], sizes = [8, 2], strides = [1, 1]} : vector<8x16xf32> to vector<8x2xf32>
    %32 = vector.extract_strided_slice %0 {offsets = [0, 2], sizes = [8, 2], strides = [1, 1]} : vector<8x16xf32> to vector<8x2xf32>
    %33 = vector.extract_strided_slice %30 {offsets = [0, 0], sizes = [8, 2], strides = [1, 1]} : vector<8x128xf32> to vector<8x2xf32>
    %34 = arith.subf %32, %31 : vector<8x2xf32>
    %cst_19 = arith.constant 1.000000e+00 : f32
    %35 = vector.broadcast %cst_19 : f32 to vector<8x2xf32>
    %36 = arith.addf %33, %35 : vector<8x2xf32>
    %37 = arith.mulf %34, %36 : vector<8x2xf32>
    %cst_20 = arith.constant 5.000000e-01 : f32
    %38 = vector.broadcast %cst_20 : f32 to vector<8x2xf32>
    %39 = arith.mulf %37, %38 : vector<8x2xf32>
    %40 = arith.addf %32, %31 : vector<8x2xf32>
    %cst_21 = arith.constant 5.000000e-01 : f32
    %41 = vector.broadcast %cst_21 : f32 to vector<8x2xf32>
    %42 = arith.mulf %40, %41 : vector<8x2xf32>
    %43 = arith.subf %42, %39 : vector<8x2xf32>
    %cst_22 = arith.constant 0.000000e+00 : f32
    %44 = vector.broadcast %cst_22 : f32 to vector<8x2xf32>
    %45 = arith.cmpf olt, %43, %44 : vector<8x2xf32>
    %46 = arith.subf %42, %39 : vector<8x2xf32>
    %cst_23 = arith.constant 0.000000e+00 : f32
    %47 = vector.broadcast %cst_23 : f32 to vector<8x2xf32>
    %48 = arith.select %45, %47, %46 : vector<8x2xi1>, vector<8x2xf32>
    %49 = arith.addf %42, %39 : vector<8x2xf32>
    %cst_24 = arith.constant 0.000000e+00 : f32
    %50 = vector.broadcast %cst_24 : f32 to vector<8x128xf32>
    %c0_25 = arith.constant 0 : index
    %c0_26 = arith.constant 0 : index
    %51 = vector.load %arg7[%c0_25, %c0_26] : memref<8x128xf32, #tpu.memory_space<vmem>>, vector<8x128xf32>
    tpu.vector_store %arg7[%c0_25, %c0_26], %50 {strides = array<i32>} : memref<8x128xf32, #tpu.memory_space<vmem>>, vector<8x128xf32>,
    %c0_27 = arith.constant 0 : index
    %c0_28 = arith.constant 0 : index
    %52 = vector.load %arg7[%c0_27, %c0_28] : memref<8x128xf32, #tpu.memory_space<vmem>>, vector<8x2xf32>
    tpu.vector_store %arg7[%c0_27, %c0_28], %48 {strides = array<i32>} : memref<8x128xf32, #tpu.memory_space<vmem>>, vector<8x2xf32>,
    %c0_29 = arith.constant 0 : index
    %c2 = arith.constant 2 : index
    %53 = vector.load %arg7[%c0_29, %c2] : memref<8x128xf32, #tpu.memory_space<vmem>>, vector<8x2xf32>
    tpu.vector_store %arg7[%c0_29, %c2], %49 {strides = array<i32>} : memref<8x128xf32, #tpu.memory_space<vmem>>, vector<8x2xf32>,
    return
  }
}

</mosaic_0001>

<llo_original>
// kernel: workload_transfer_forward.1
$region0: #{workload_transfer_forward.1}
  #allocation0 [shape = 'u32[]', space=smem, size = 0x4, offset = 0x4, fixed_abs, tag = 'smem constant byte address 0x4 - core index']
  #allocation1 [shape = 'u32[144,128]{1,0:T(1,128)}', space=vmem, size = 0x12000, scoped, tag = 'internal scratch']
  %s0 = inlined_call_operand.vmem [shape: f32[8,16], index: 0, kind: input, shape index: {}]
  %s1 = inlined_call_operand.vmem [shape: bf16[16,128], index: 1, kind: input, shape index: {}]
  %s2 = inlined_call_operand.vmem [shape: f32[1,128], index: 2, kind: input, shape index: {}]
  %s3 = inlined_call_operand.vmem [shape: bf16[32,128], index: 3, kind: input, shape index: {}]
  %s4 = inlined_call_operand.vmem [shape: f32[1,128], index: 4, kind: input, shape index: {}]
  %s5 = inlined_call_operand.vmem [shape: bf16[32,128], index: 5, kind: input, shape index: {}]
  %s6 = inlined_call_operand.vmem [shape: f32[1,128], index: 6, kind: input, shape index: {}]
  %s7 = inlined_call_operand.vmem [shape: f32[8,128], index: 7, kind: output, shape index: {}]
  %s8 = sld [smem:[#allocation0]]
  $region38: #{workload_transfer_forward.1} parent=0
    _
  %s10 = ssub.s32 1, %s8
  %s11 = scalar_select 0, %s10, %s8
  // Predicated region
  $region2: #{workload_transfer_forward.1} parent=0 // pred_check
    _
  $region3: #{workload_transfer_forward.1} parent=0 // pred_check_branch
    %13 = sbr.rel (0) target = $region5
  $region4: #{workload_transfer_forward.1} parent=0 // pred_region
    _
  $region5: #{workload_transfer_forward.1} parent=0 // pred_fallthru
    _
  // Predicated region
  $region6: #{workload_transfer_forward.1} parent=0 // pred_check
    _
  $region7: #{workload_transfer_forward.1} parent=0 // pred_check_branch
    %15 = sbr.rel (0) target = $region9
  $region8: #{workload_transfer_forward.1} parent=0 // pred_region
    _
  $region9: #{workload_transfer_forward.1} parent=0 // pred_fallthru
    _
  // Predicated region
  $region10: #{workload_transfer_forward.1} parent=0 // pred_check
    _
  $region11: #{workload_transfer_forward.1} parent=0 // pred_check_branch
    %17 = sbr.rel (0) target = $region13
  $region12: #{workload_transfer_forward.1} parent=0 // pred_region
    _
  $region13: #{workload_transfer_forward.1} parent=0 // pred_fallthru
    _
  // Predicated region
  $region14: #{workload_transfer_forward.1} parent=0 // pred_check
    _
  $region15: #{workload_transfer_forward.1} parent=0 // pred_check_branch
    %19 = sbr.rel (0) target = $region17
  $region16: #{workload_transfer_forward.1} parent=0 // pred_region
    _
  $region17: #{workload_transfer_forward.1} parent=0 // pred_fallthru
    _
  // Predicated region
  $region18: #{workload_transfer_forward.1} parent=0 // pred_check
    _
  $region19: #{workload_transfer_forward.1} parent=0 // pred_check_branch
    %21 = sbr.rel (0) target = $region21
  $region20: #{workload_transfer_forward.1} parent=0 // pred_region
    _
  $region21: #{workload_transfer_forward.1} parent=0 // pred_fallthru
    _
  // Predicated region
  $region22: #{workload_transfer_forward.1} parent=0 // pred_check
    _
  $region23: #{workload_transfer_forward.1} parent=0 // pred_check_branch
    %23 = sbr.rel (0) target = $region25
  $region24: #{workload_transfer_forward.1} parent=0 // pred_region
    _
  $region25: #{workload_transfer_forward.1} parent=0 // pred_fallthru
    _
  // Predicated region
  $region26: #{workload_transfer_forward.1} parent=0 // pred_check
    _
  $region27: #{workload_transfer_forward.1} parent=0 // pred_check_branch
    %25 = sbr.rel (0) target = $region29
  $region28: #{workload_transfer_forward.1} parent=0 // pred_region
    _
  $region29: #{workload_transfer_forward.1} parent=0 // pred_fallthru
    _
  %v27 = vld [vmem:[%s0] sm:$0xff]
  %v28 = vpack.c.bf16 %v27, %v27
  %v29 = vld [vmem:[%s1] sm:$0xf]
  %v30 = vld [vmem:[%s1 + $0x4] sm:$0xf]
  %v31 = vld [vmem:[%s2] sm:$0x1]
  %v33 = vlaneseq
  %v34 = vshrl.u32 %v33, 7
  %v35 = vsub.s32 0, %v34
  %v36 = vrot.slane %v31, %v35
  %v40 = vunpack.c.l.b16 %v29
  %v41 = vunpack.c.l.b16 %v30
  %v42 = vpack.c.b16 %v41, %v40
  %vm44 = vcmask 130048
  %v46 = vsel %vm44, %v28, 0
  %48 = vmatprep.subr.bf16.mxu0 0
  %49 = vmatpush1.bf16.msra.mxu0 0
  %50 = vmatprep.subr.bf16.mxu0 0
  %51 = vmatpush1.bf16.msra.mxu0 0
  %52 = vmatprep.subr.bf16.mxu0 0
  %53 = vmatpush1.bf16.msra.mxu0 0
  %54 = vmatprep.subr.bf16.mxu0 0
  %55 = vmatpush1.bf16.msra.mxu0 0
  %56 = vmatprep.subr.bf16.mxu0 0
  %57 = vmatpush1.bf16.msra.mxu0 0
  %58 = vmatprep.subr.bf16.mxu0 0
  %59 = vmatpush1.bf16.msra.mxu0 0
  %60 = vmatprep.subr.bf16.mxu0 0
  %61 = vmatpush1.bf16.msra.mxu0 0
  %62 = vmatprep.subr.bf16.mxu0 0
  %63 = vmatpush1.bf16.msra.mxu0 %v42
  %64 = vmatprep.subr.bf16.mxu0 0
  %65 = vmatpush2.bf16.msra.mxu0 0
  %66 = vmatprep.subr.bf16.mxu0 0
  %67 = vmatpush2.bf16.msra.mxu0 0
  %68 = vmatprep.subr.bf16.mxu0 0
  %69 = vmatpush2.bf16.msra.mxu0 0
  %70 = vmatprep.subr.bf16.mxu0 0
  %71 = vmatpush2.bf16.msra.mxu0 0
  %72 = vmatprep.subr.bf16.mxu0 0
  %73 = vmatpush2.bf16.msra.mxu0 0
  %74 = vmatprep.subr.bf16.mxu0 0
  %75 = vmatpush2.bf16.msra.mxu0 0
  %76 = vmatprep.subr.bf16.mxu0 0
  %77 = vmatpush2.bf16.msra.mxu0 0
  %78 = vmatprep.subr.bf16.mxu0 0
  %79 = vmatpush2.bf16.msra.mxu0 0
  %80 = vmatprep.mubr.bf16.mxu0 0
  %81 = vmatmul.mubr.bf16.gmra.mxu0 %v46
  %v82 = vpop.f32.mrf.mxu0
  %v83 = vadd.f32 %v36, %v82
  %v84 = vpop.f32.mrf.mxu0
  %v85 = vpop.f32.mrf.mxu0
  %v86 = vpop.f32.mrf.mxu0
  %87 = vdwg.mxu0
  %v88 = vmax.f32 %v83, 0.0
  %v89 = vpack.c.bf16 %v88, %v88
  %v90 = vld [vmem:[%s3] sm:$0xf]
  %v91 = vld [vmem:[%s3 + $0x4] sm:$0xf]
  %v92 = vld [vmem:[%s3 + $0x8] sm:$0xf]
  %v93 = vld [vmem:[%s3 + $0xc] sm:$0xf]
  %v94 = vld [vmem:[%s4] sm:$0x1]
  %v96 = vlaneseq
  %v97 = vshrl.u32 %v96, 7
  %v98 = vsub.s32 0, %v97
  %v99 = vrot.slane %v94, %v98
  %v105 = vunpack.c.l.b16 %v90
  %v106 = vunpack.c.l.b16 %v91
  %v107 = vunpack.c.l.b16 %v92
  %v108 = vunpack.c.l.b16 %v93
  %v109 = vpack.c.b16 %v106, %v105
  %v110 = vpack.c.b16 %v108, %v107
  %vm113 = vcmask 261120
  %v115 = vsel %vm113, %v89, 0
  %117 = vmatprep.subr.bf16.mxu0 0
  %118 = vmatpush1.bf16.msra.mxu0 0
  %119 = vmatprep.subr.bf16.mxu0 0
  %120 = vmatpush1.bf16.msra.mxu0 0
  %121 = vmatprep.subr.bf16.mxu0 0
  %122 = vmatpush1.bf16.msra.mxu0 0
  %123 = vmatprep.subr.bf16.mxu0 0
  %124 = vmatpush1.bf16.msra.mxu0 0
  %125 = vmatprep.subr.bf16.mxu0 0
  %126 = vmatpush1.bf16.msra.mxu0 0
  %127 = vmatprep.subr.bf16.mxu0 0
  %128 = vmatpush1.bf16.msra.mxu0 0
  %129 = vmatprep.subr.bf16.mxu0 0
  %130 = vmatpush1.bf16.msra.mxu0 %v110
  %131 = vmatprep.subr.bf16.mxu0 0
  %132 = vmatpush1.bf16.msra.mxu0 %v109
  %133 = vmatprep.subr.bf16.mxu0 0
  %134 = vmatpush2.bf16.msra.mxu0 0
  %135 = vmatprep.subr.bf16.mxu0 0
  %136 = vmatpush2.bf16.msra.mxu0 0
  %137 = vmatprep.subr.bf16.mxu0 0
  %138 = vmatpush2.bf16.msra.mxu0 0
  %139 = vmatprep.subr.bf16.mxu0 0
  %140 = vmatpush2.bf16.msra.mxu0 0
  %141 = vmatprep.subr.bf16.mxu0 0
  %142 = vmatpush2.bf16.msra.mxu0 0
  %143 = vmatprep.subr.bf16.mxu0 0
  %144 = vmatpush2.bf16.msra.mxu0 0
  %145 = vmatprep.subr.bf16.mxu0 0
  %146 = vmatpush2.bf16.msra.mxu0 0
  %147 = vmatprep.subr.bf16.mxu0 0
  %148 = vmatpush2.bf16.msra.mxu0 0
  %149 = vmatprep.mubr.bf16.mxu0 0
  %150 = vmatmul.mubr.bf16.gmra.mxu0 %v115
  %v151 = vpop.f32.mrf.mxu0
  %v152 = vadd.f32 %v99, %v151
  %v153 = vpop.f32.mrf.mxu0
  %v154 = vpop.f32.mrf.mxu0
  %v155 = vpop.f32.mrf.mxu0
  %156 = vdwg.mxu0
  %v157 = vmax.f32 %v152, 0.0
  %v158 = vpack.c.bf16 %v157, %v157
  %v159 = vld [vmem:[%s5] sm:$0xf]
  %v160 = vld [vmem:[%s5 + $0x4] sm:$0xf]
  %v161 = vld [vmem:[%s5 + $0x8] sm:$0xf]
  %v162 = vld [vmem:[%s5 + $0xc] sm:$0xf]
  %v163 = vld [vmem:[%s6] sm:$0x1]
  %v165 = vlaneseq
  %v166 = vshrl.u32 %v165, 7
  %v167 = vsub.s32 0, %v166
  %v168 = vrot.slane %v163, %v167
  %v174 = vunpack.c.l.b16 %v159
  %v175 = vunpack.c.l.b16 %v160
  %v176 = vunpack.c.l.b16 %v161
  %v177 = vunpack.c.l.b16 %v162
  %v178 = vpack.c.b16 %v175, %v174
  %v179 = vpack.c.b16 %v177, %v176
  %v183 = vsel %vm113, %v158, 0
  %185 = vmatprep.subr.bf16.mxu0 0
  %186 = vmatpush1.bf16.msra.mxu0 0
  %187 = vmatprep.subr.bf16.mxu0 0
  %188 = vmatpush1.bf16.msra.mxu0 0
  %189 = vmatprep.subr.bf16.mxu0 0
  %190 = vmatpush1.bf16.msra.mxu0 0
  %191 = vmatprep.subr.bf16.mxu0 0
  %192 = vmatpush1.bf16.msra.mxu0 0
  %193 = vmatprep.subr.bf16.mxu0 0
  %194 = vmatpush1.bf16.msra.mxu0 0
  %195 = vmatprep.subr.bf16.mxu0 0
  %196 = vmatpush1.bf16.msra.mxu0 0
  %197 = vmatprep.subr.bf16.mxu0 0
  %198 = vmatpush1.bf16.msra.mxu0 %v179
  %199 = vmatprep.subr.bf16.mxu0 0
  %200 = vmatpush1.bf16.msra.mxu0 %v178
  %201 = vmatprep.subr.bf16.mxu0 0
  %202 = vmatpush2.bf16.msra.mxu0 0
  %203 = vmatprep.subr.bf16.mxu0 0
  %204 = vmatpush2.bf16.msra.mxu0 0
  %205 = vmatprep.subr.bf16.mxu0 0
  %206 = vmatpush2.bf16.msra.mxu0 0
  %207 = vmatprep.subr.bf16.mxu0 0
  %208 = vmatpush2.bf16.msra.mxu0 0
  %209 = vmatprep.subr.bf16.mxu0 0
  %210 = vmatpush2.bf16.msra.mxu0 0
  %211 = vmatprep.subr.bf16.mxu0 0
  %212 = vmatpush2.bf16.msra.mxu0 0
  %213 = vmatprep.subr.bf16.mxu0 0
  %214 = vmatpush2.bf16.msra.mxu0 0
  %215 = vmatprep.subr.bf16.mxu0 0
  %216 = vmatpush2.bf16.msra.mxu0 0
  %217 = vmatprep.mubr.bf16.mxu0 0
  %218 = vmatmul.mubr.bf16.gmra.mxu0 %v183
  %v219 = vpop.f32.mrf.mxu0
  %v220 = vadd.f32 %v168, %v219
  %v221 = vpop.f32.mrf.mxu0
  %v222 = vpop.f32.mrf.mxu0
  %v223 = vpop.f32.mrf.mxu0
  %224 = vdwg.mxu0
  %v225 = vsub.f32 0.0, %v220
  %v226 = vmul.f32 %v225, 1.442695
  %v227 = vpow.pop %v226
  %v228 = vadd.f32 %v227, 1.0
  %v229 = vrcp.pop %v228
  %231 = vrot.lane.b32.xlu0 %v27, 2
  %v232 = vpop.permute.xlu0 %231
  %v234 = vsub.f32 %v27, %v232
  %v235 = vadd.f32 %v229, 1.0
  %237 = vrot.lane.b32.xlu0 %v235, 2
  %v238 = vpop.permute.xlu0 %237
  %v240 = vmul.f32 %v234, %v238
  %v241 = vmul.f32 %v240, 0.5
  %v242 = vadd.f32 %v27, %v232
  %v243 = vmul.f32 %v242, 0.5
  %v244 = vsub.f32 %v243, %v241
  %vm245 = vcmp.lt.f32.partialorder %v244, 0.0
  %v246 = vsel %vm245, 0.0, %v244
  %v247 = vadd.f32 %v243, %v241
  %248 = vst [vmem:[%s7] sm:$0xff] 0.0
  %250 = vrot.lane.b32.xlu0 %v246, 126
  %v251 = vpop.permute.xlu0 %250
  %vm253 = vcmask 15360
  %254 = vst.msk [vmem:[%s7] sm:$0xff] %vm253, %v251
  %vm255 = vcmask 31760
  %256 = vst.msk [vmem:[%s7] sm:$0xff] %vm255, %v247
  // Predicated region
  $region30: #{workload_transfer_forward.1} parent=0 // pred_check
    _
  $region31: #{workload_transfer_forward.1} parent=0 // pred_check_branch
    %258 = sbr.rel (0) target = $region33
  $region32: #{workload_transfer_forward.1} parent=0 // pred_region
    _
  $region33: #{workload_transfer_forward.1} parent=0 // pred_fallthru
    _
  // Predicated region
  $region34: #{workload_transfer_forward.1} parent=0 // pred_check
    _
  $region35: #{workload_transfer_forward.1} parent=0 // pred_check_branch
    %260 = sbr.rel (0) target = $region37
  $region36: #{workload_transfer_forward.1} parent=0 // pred_region
    _
  $region37: #{workload_transfer_forward.1} parent=0 // pred_fallthru
    _

</llo_original>
